<compile_context>
chip_gen: v7x
topology: tpu7x:2x2x1
jax: 0.10.0
libtpu: 0.0.40
codegen_flags: <defaults>
</compile_context>

<pallas_src>
import functools

import jax
import jax.numpy as jnp
from jax import lax
from jax.experimental import pallas as pl
from jax.experimental.pallas import tpu as pltpu


# ---------------------------------------------------------------------------
# Fused kernel: fake-quant/dequant the weight tile, then y = x @ w.T + b.
# qp_ref (SMEM, scalar-prefetched) holds [scale, 1/scale, zero_point].
# ---------------------------------------------------------------------------
def fused_qlinear_kernel(qp_ref, x_ref, w_ref, b_ref, o_ref, acc_ref, *,
                         qmax, quantize, compute_dtype):
    k = pl.program_id(2)

    @pl.when(k == 0)
    def _():
        acc_ref[...] = jnp.zeros_like(acc_ref)

    w = w_ref[...].astype(jnp.float32)
    if quantize:  # static (trace-time) switch on current_bits < 32
        scale = qp_ref[0]
        inv_scale = qp_ref[1]
        zp = qp_ref[2]
        q = jnp.clip(jnp.round(w * inv_scale + zp), 0.0, qmax)
        w = (q - zp) * scale  # rides in VALU slots under the MXU

    # x:(tm,tk) contracted with w:(tn,tk) over dim 1 of both (no materialized .T).
    acc_ref[...] += lax.dot_general(
        x_ref[...].astype(compute_dtype),
        w.astype(compute_dtype),
        dimension_numbers=(((1,), (1,)), ((), ())),
        preferred_element_type=jnp.float32,
    )

    @pl.when(k == pl.num_programs(2) - 1)
    def _():
        o_ref[...] = (acc_ref[...] + b_ref[...]).astype(o_ref.dtype)


# ---------------------------------------------------------------------------
# Wrapper
# ---------------------------------------------------------------------------
def _round_up(x, m):
    return (x + m - 1) // m * m


def _pad2d(a, rows, cols):
    r, c = a.shape
    if r == rows and c == cols:
        return a  # fast path: no HBM copy
    return jnp.pad(a, ((0, rows - r), (0, cols - c)))


_M_CAP, _N_CAP, _K_CAP = 512, 512, 1024


def quantized_linear(x, weight, bias=None, current_bits=8,
                     compute_dtype=jnp.bfloat16):
    """Forward of QuantizedLinear: fake-quantize weight, then x @ w.T + bias."""
    B, K = x.shape
    N, K2 = weight.shape
    assert K == K2
    out_dtype = x.dtype
    quantize = current_bits < 32
    qmax = float(2 ** min(current_bits, 31) - 1)  # unused when quantize=False

    # --- tile selection: full (unpadded) extent when it fits, else capped ----
    m_align = 16 if (compute_dtype == jnp.bfloat16 and B >= 16) else 8
    tm = _round_up(B, m_align) if B <= _M_CAP else _M_CAP
    tn = _round_up(N, 8) if N <= _N_CAP else _N_CAP
    tk = K if K <= _K_CAP else _K_CAP
    m_pad = _round_up(B, tm)
    n_pad = _round_up(N, tn)
    k_pad = _round_up(K, tk)

    # v7x has 2 TensorCores sharing the grid over "parallel" axes; split N when
    # both parallel extents would otherwise be 1 (keeps tn a 128-multiple).
    if m_pad // tm == 1 and n_pad // tn == 1 and tn % 256 == 0:
        tn //= 2

    # --- quant params: tiny global reduction, done in plain XLA (hoisted) ----
    if quantize:
        w_min = jnp.min(weight).astype(jnp.float32)
        w_max = jnp.max(weight).astype(jnp.float32)
        scale = (w_max - w_min) / jnp.float32(qmax)
        # NOTE: diverges from the reference for constant weights (reference
        # would produce NaN/Inf); we clamp scale to 1.0 instead.
        scale = jnp.where(scale > 0, scale, jnp.float32(1.0))
        zero_point = jnp.clip(jnp.round(-w_min / scale), 0.0, qmax)
        qparams = jnp.stack([scale, 1.0 / scale, zero_point]).astype(jnp.float32)
    else:
        qparams = jnp.zeros((3,), jnp.float32)

    # --- operand padding (no-op copies when already tile-aligned) ------------
    # Padded weight zeros dequantize to exactly 0: (clip(round(zp),0,qmax)-zp)*s = 0.
    x_p = _pad2d(x, m_pad, k_pad)
    w_p = _pad2d(weight, n_pad, k_pad)
    b = jnp.zeros((N,), jnp.float32) if bias is None else bias.astype(jnp.float32)
    b_p = (jnp.pad(b, (0, n_pad - N)) if n_pad != N else b).reshape(1, n_pad)

    grid = (m_pad // tm, n_pad // tn, k_pad // tk)
    out = pl.pallas_call(
        functools.partial(fused_qlinear_kernel, qmax=qmax, quantize=quantize,
                          compute_dtype=compute_dtype),
        out_shape=jax.ShapeDtypeStruct((m_pad, n_pad), out_dtype),
        grid_spec=pltpu.PrefetchScalarGridSpec(
            num_scalar_prefetch=1,
            grid=grid,
            in_specs=[
                pl.BlockSpec((tm, tk), lambda i, j, k, qp: (i, k)),   # x
                pl.BlockSpec((tn, tk), lambda i, j, k, qp: (j, k)),   # raw weight
                pl.BlockSpec((1, tn), lambda i, j, k, qp: (0, j)),    # bias
            ],
            out_specs=pl.BlockSpec((tm, tn), lambda i, j, k, qp: (i, j)),
            scratch_shapes=[pltpu.VMEM((tm, tn), jnp.float32)],
        ),
        compiler_params=pltpu.CompilerParams(
            dimension_semantics=("parallel", "parallel", "arbitrary"),
            vmem_limit_bytes=48 * 1024 * 1024,  # v7x-safe (64 MiB physical)
        ),
    )(qparams, x_p, w_p, b_p)

    if (m_pad, n_pad) != (B, N):
        out = out[:B, :N]
    return out


# ---------------------------------------------------------------------------
# Pure-JAX reference (mirrors the PyTorch forward, f32 throughout).
# ---------------------------------------------------------------------------
def quantized_linear_ref(x, weight, bias, current_bits=8):
    if current_bits < 32:
        qmax = float(2 ** current_bits - 1)
        scale = (weight.max() - weight.min()) / qmax
        zero_point = jnp.clip(jnp.round(-weight.min() / scale), 0.0, qmax)
        q_w = jnp.clip(jnp.round(weight / scale + zero_point), 0.0, qmax)
        dq_w = (q_w - zero_point) * scale
    else:
        dq_w = weight
    return x @ dq_w.T + bias


if __name__ == "__main__":
    # Module config (small, consistent with QuantizedLinear(in, out, bias=True))
    in_features = 32
    out_features = 16
    batch = 8
    initial_bits = 8  # current_bits == initial_bits at construction

    key = jax.random.PRNGKey(0)
    kx, kw = jax.random.split(key)

    # kaiming_normal_(mode='fan_out', nonlinearity='relu') => std = sqrt(2/fan_out)
    weight = jax.random.normal(kw, (out_features, in_features), jnp.float32) * jnp.sqrt(
        2.0 / out_features
    )
    bias = jnp.zeros((out_features,), jnp.float32)
    x = jax.random.normal(kx, (batch, in_features), jnp.float32)

    expected = quantized_linear_ref(x, weight, bias, current_bits=initial_bits)

    # Default path: bf16 MXU inputs, f32 accumulation (relaxed tolerance).
    out_bf16 = quantized_linear(x, weight, bias, current_bits=initial_bits)
    out_bf16 = jax.block_until_ready(out_bf16)
    assert out_bf16.shape == (batch, out_features)
    assert jnp.allclose(out_bf16, expected, atol=5e-2, rtol=5e-2), "bf16 path mismatch"

    # Full-precision path matches the reference tightly.
    out_f32 = quantized_linear(
        x, weight, bias, current_bits=initial_bits, compute_dtype=jnp.float32
    )
    out_f32 = jax.block_until_ready(out_f32)
    assert jnp.allclose(out_f32, expected, atol=1e-5, rtol=1e-5), "f32 path mismatch"

    # current_bits >= 32: quantization skipped entirely.
    out_nq = quantized_linear(
        x, weight, bias, current_bits=32, compute_dtype=jnp.float32
    )
    out_nq = jax.block_until_ready(out_nq)
    expected_nq = x @ weight.T + bias
    assert jnp.allclose(out_nq, expected_nq, atol=1e-5, rtol=1e-5), "no-quant mismatch"

    print("KERNEL_OK")
</pallas_src>

<mosaic_0001>
module attributes {stable_mosaic.version = 11 : i64} {
  func.func @fused_qlinear_kernel(%arg0: i32, %arg1: i32, %arg2: i32, %arg3: memref<3xf32, #tpu.memory_space<smem>>, %arg4: memref<8x32xf32, #tpu.memory_space<vmem>>, %arg5: memref<16x32xf32, #tpu.memory_space<vmem>>, %arg6: memref<1x16xf32, #tpu.memory_space<vmem>>, %arg7: memref<8x16xf32, #tpu.memory_space<vmem>>, %arg8: memref<8x16xf32, #tpu.memory_space<vmem>>) attributes {dimension_semantics = [#tpu.dimension_semantics<parallel>, #tpu.dimension_semantics<parallel>, #tpu.dimension_semantics<arbitrary>], iteration_bounds = array<i64: 1, 1, 1>, scalar_prefetch = 1 : i64, scratch_operands = 1 : i64, tpu.core_type = #tpu.core_type<tc>, window_params = [{transform_indices = @transform_0, window_bounds = array<i64: 8, 32>}, {transform_indices = @transform_1, window_bounds = array<i64: 16, 32>}, {transform_indices = @transform_2, window_bounds = array<i64: 1, 16>}, {transform_indices = @transform_3, window_bounds = array<i64: 8, 16>}]} {
    %c0_i32 = arith.constant 0 : i32
    %0 = arith.cmpi eq, %arg2, %c0_i32 : i32
    %1 = arith.extui %0 : i1 to i32
    %c0_i32_0 = arith.constant 0 : i32
    %2 = arith.cmpi ne, %1, %c0_i32_0 : i32
    scf.if %2 {
      %cst_13 = arith.constant 0.000000e+00 : f32
      %30 = vector.broadcast %cst_13 : f32 to vector<8x16xf32>
      %c0_14 = arith.constant 0 : index
      %c0_15 = arith.constant 0 : index
      %31 = vector.load %arg8[%c0_14, %c0_15] : memref<8x16xf32, #tpu.memory_space<vmem>>, vector<8x16xf32>
      tpu.vector_store %arg8[%c0_14, %c0_15], %30 {strides = array<i32>} : memref<8x16xf32, #tpu.memory_space<vmem>>, vector<8x16xf32>,
    } else {
    }
    %c0 = arith.constant 0 : index
    %c0_1 = arith.constant 0 : index
    %3 = vector.load %arg5[%c0, %c0_1] : memref<16x32xf32, #tpu.memory_space<vmem>>, vector<16x32xf32>
    %c0_2 = arith.constant 0 : index
    %4 = memref.load %arg3[%c0_2] : memref<3xf32, #tpu.memory_space<smem>>
    %c1 = arith.constant 1 : index
    %5 = memref.load %arg3[%c1] : memref<3xf32, #tpu.memory_space<smem>>
    %c2 = arith.constant 2 : index
    %6 = memref.load %arg3[%c2] : memref<3xf32, #tpu.memory_space<smem>>
    %7 = vector.broadcast %5 : f32 to vector<16x32xf32>
    %8 = arith.mulf %3, %7 : vector<16x32xf32>
    %9 = vector.broadcast %6 : f32 to vector<16x32xf32>
    %10 = arith.addf %8, %9 : vector<16x32xf32>
    %11 = math.roundeven %10 : vector<16x32xf32>
    %cst = arith.constant 0.000000e+00 : f32
    %cst_3 = arith.constant 2.550000e+02 : f32
    %12 = vector.broadcast %cst : f32 to vector<16x32xf32>
    %13 = arith.maximumf %12, %11 : vector<16x32xf32>
    %14 = vector.broadcast %cst_3 : f32 to vector<16x32xf32>
    %15 = arith.minimumf %14, %13 : vector<16x32xf32>
    %16 = vector.broadcast %6 : f32 to vector<16x32xf32>
    %17 = arith.subf %15, %16 : vector<16x32xf32>
    %18 = vector.broadcast %4 : f32 to vector<16x32xf32>
    %19 = arith.mulf %17, %18 : vector<16x32xf32>
    %c0_4 = arith.constant 0 : index
    %c0_5 = arith.constant 0 : index
    %20 = vector.load %arg8[%c0_4, %c0_5] : memref<8x16xf32, #tpu.memory_space<vmem>>, vector<8x16xf32>
    %c0_6 = arith.constant 0 : index
    %c0_7 = arith.constant 0 : index
    %21 = vector.load %arg4[%c0_6, %c0_7] : memref<8x32xf32, #tpu.memory_space<vmem>>, vector<8x32xf32>
    %22 = arith.truncf %21 : vector<8x32xf32> to vector<8x32xbf16>
    %23 = arith.truncf %19 : vector<16x32xf32> to vector<16x32xbf16>
    %cst_8 = arith.constant dense<0.000000e+00> : vector<8x16xf32>
    %24 = tpu.matmul %22, %23, %cst_8 {dimension_numbers = #tpu.dot_dimension_numbers<[1], [1], [0], [0], [0, 0, 1, 0], [], []>} : vector<8x32xbf16>, vector<16x32xbf16>, vector<8x16xf32> -> vector<8x16xf32>
    %25 = arith.addf %20, %24 : vector<8x16xf32>
    %c0_9 = arith.constant 0 : index
    %c0_10 = arith.constant 0 : index
    %26 = vector.load %arg8[%c0_9, %c0_10] : memref<8x16xf32, #tpu.memory_space<vmem>>, vector<8x16xf32>
    tpu.vector_store %arg8[%c0_9, %c0_10], %25 {strides = array<i32>} : memref<8x16xf32, #tpu.memory_space<vmem>>, vector<8x16xf32>,
    %c0_i32_11 = arith.constant 0 : i32
    %27 = arith.cmpi eq, %arg2, %c0_i32_11 : i32
    %28 = arith.extui %27 : i1 to i32
    %c0_i32_12 = arith.constant 0 : i32
    %29 = arith.cmpi ne, %28, %c0_i32_12 : i32
    scf.if %29 {
      %c0_13 = arith.constant 0 : index
      %c0_14 = arith.constant 0 : index
      %30 = vector.load %arg8[%c0_13, %c0_14] : memref<8x16xf32, #tpu.memory_space<vmem>>, vector<8x16xf32>
      %c0_15 = arith.constant 0 : index
      %c0_16 = arith.constant 0 : index
      %31 = vector.load %arg6[%c0_15, %c0_16] : memref<1x16xf32, #tpu.memory_space<vmem>>, vector<1x16xf32>
      %32 = vector.broadcast %31 : vector<1x16xf32> to vector<8x16xf32>
      %33 = arith.addf %30, %32 : vector<8x16xf32>
      %c0_17 = arith.constant 0 : index
      %c0_18 = arith.constant 0 : index
      %34 = vector.load %arg7[%c0_17, %c0_18] : memref<8x16xf32, #tpu.memory_space<vmem>>, vector<8x16xf32>
      tpu.vector_store %arg7[%c0_17, %c0_18], %33 {strides = array<i32>} : memref<8x16xf32, #tpu.memory_space<vmem>>, vector<8x16xf32>,
    } else {
    }
    return
  }
  func.func @transform_0(%arg0: i32, %arg1: i32, %arg2: i32, %arg3: memref<3xf32, #tpu.memory_space<smem>>) -> (i32, i32) {
    %c0_i32 = arith.constant 0 : i32
    return %arg0, %arg2 : i32, i32
  }
  func.func @transform_1(%arg0: i32, %arg1: i32, %arg2: i32, %arg3: memref<3xf32, #tpu.memory_space<smem>>) -> (i32, i32) {
    %c0_i32 = arith.constant 0 : i32
    return %arg1, %arg2 : i32, i32
  }
  func.func @transform_2(%arg0: i32, %arg1: i32, %arg2: i32, %arg3: memref<3xf32, #tpu.memory_space<smem>>) -> (i32, i32) {
    %c0_i32 = arith.constant 0 : i32
    %c0_i32_0 = arith.constant 0 : i32
    return %c0_i32, %arg1 : i32, i32
  }
  func.func @transform_3(%arg0: i32, %arg1: i32, %arg2: i32, %arg3: memref<3xf32, #tpu.memory_space<smem>>) -> (i32, i32) {
    %c0_i32 = arith.constant 0 : i32
    return %arg0, %arg1 : i32, i32
  }
}

</mosaic_0001>

<llo_original>
// kernel: tpu_custom_call.1
$region0: #{tpu_custom_call.1}
  #allocation0 [shape = 'u32[]', space=smem, size = 0x4, offset = 0x4, fixed_abs, tag = 'smem constant byte address 0x4 - core index']
  #allocation1 [shape = 'u32[144,128]{1,0:T(1,128)}', space=vmem, size = 0x12000, scoped, tag = 'internal scratch']
  #allocation2 [shape = 'f32[8,16]{1,0:T(8,128)}', space=vmem, size = 0x1000, scoped, tag = 'scratch operand']
  #allocation3 [shape = 's32[1]{0}', space=sflag, size = 0x4, scoped, tag = 'scoped memory for tpu_custom_call.1']
  #allocation4 [shape = 'u8[512]{0}', space=smem, size = 0x200, scoped, tag = 'prefetched SMEM operand 0']
  %s0 = inlined_call_operand.hbm [shape: f32[3], index: 0, kind: input, shape index: {}]
  %s1 = inlined_call_operand.hbm [shape: f32[8,32], index: 1, kind: input, shape index: {}]
  %s2 = inlined_call_operand.hbm [shape: f32[16,32], index: 2, kind: input, shape index: {}]
  %s3 = inlined_call_operand.vmem [shape: f32[1,16], index: 3, kind: input, shape index: {}]
  %s4 = inlined_call_operand.hbm [shape: f32[8,16], index: 4, kind: output, shape index: {}]
  %s5 = sld [smem:[#allocation0]]
  $region38: #{tpu_custom_call.1} parent=0
    _
  %s7 = ssub.s32 1, %s5
  %s8 = scalar_select 0, %s7, %s5
  %10 = dma.hbm_to_smem %s0, 16, [#allocation4], [#allocation3]
  %11 = dma.done [#allocation3], 16
  %12 = sfence
  $region1: #{tpu_custom_call.1} parent=0
    #allocation5 [shape = 'u8[4096]{0}', space=vmem, size = 0x1000, scoped, tag = 'input window, operand 1, single buffered']
    #allocation6 [shape = 's32[1]{0}', space=sflag, size = 0x4, scoped, tag = 'scoped memory for tpu_custom_call.1']
    #allocation7 [shape = 's32[1]{0}', space=sflag, size = 0x4, scoped, tag = 'scoped memory for tpu_custom_call.1']
    #allocation8 [shape = 'u8[8192]{0}', space=vmem, size = 0x2000, scoped, tag = 'input window, operand 2, single buffered']
    #allocation9 [shape = 's32[1]{0}', space=sflag, size = 0x4, scoped, tag = 'scoped memory for tpu_custom_call.1']
    #allocation10 [shape = 'u8[4096]{0}', space=vmem, size = 0x1000, scoped, tag = 'output window, operand 0, single buffered']
    %13 = vsyncpa [#allocation6], 0
    %14 = vsyncpa [#allocation9], 0
    %15 = vsyncpa [#allocation7], 0
    // Predicated region
    $region2: #{tpu_custom_call.1} parent=1 // pred_check
      _
    $region3: #{tpu_custom_call.1} parent=1 // pred_check_branch
      %17 = sbr.rel (0) target = $region5
    $region4: #{tpu_custom_call.1} parent=1 // pred_region
      %s19 = ssub.s32 128, 128
      %20 = vsyncadd [#allocation6], %s19
      %s22 = sshll.u32 [#allocation5], 4
      %s23 = int_to_ptr.vmem [resolvable:$true] %s22
      %25 = dma.hbm_to_vmem [thread:$0]  %s1, 128, %s23, [#allocation6]
    $region5: #{tpu_custom_call.1} parent=1 // pred_fallthru
      _
    // Predicated region
    $region6: #{tpu_custom_call.1} parent=1 // pred_check
      _
    $region7: #{tpu_custom_call.1} parent=1 // pred_check_branch
      %27 = sbr.rel (0) target = $region9
    $region8: #{tpu_custom_call.1} parent=1 // pred_region
      %s29 = ssub.s32 256, 256
      %30 = vsyncadd [#allocation9], %s29
      %s31 = sshll.u32 [#allocation8], 4
      %s32 = int_to_ptr.vmem [resolvable:$true] %s31
      %37 = dma.hbm_to_vmem [thread:$0]  %s2, 256, %s32, [#allocation9], 128, 128, 8
    $region9: #{tpu_custom_call.1} parent=1 // pred_fallthru
      _
    // Predicated region
    $region10: #{tpu_custom_call.1} parent=1 // pred_check
      _
    $region11: #{tpu_custom_call.1} parent=1 // pred_check_branch
      %39 = sbr.rel (0) target = $region13
    $region12: #{tpu_custom_call.1} parent=1 // pred_region
      _
    $region13: #{tpu_custom_call.1} parent=1 // pred_fallthru
      _
    // Predicated region
    $region14: #{tpu_custom_call.1} parent=1 // pred_check
      _
    $region15: #{tpu_custom_call.1} parent=1 // pred_check_branch
      %41 = sbr.rel (0) target = $region17
    $region16: #{tpu_custom_call.1} parent=1 // pred_region
      %42 = dma.done [#allocation6], 128
    $region17: #{tpu_custom_call.1} parent=1 // pred_fallthru
      _
    // Predicated region
    $region18: #{tpu_custom_call.1} parent=1 // pred_check
      _
    $region19: #{tpu_custom_call.1} parent=1 // pred_check_branch
      %44 = sbr.rel (0) target = $region21
    $region20: #{tpu_custom_call.1} parent=1 // pred_region
      %45 = dma.done [#allocation9], 256
    $region21: #{tpu_custom_call.1} parent=1 // pred_fallthru
      _
    %p47 = scmp.eq.s32.totalorder 0, 0
    // Predicated region
    $region22: #{tpu_custom_call.1} parent=1 // pred_check
      %p48 = pneg %p47
    $region23: #{tpu_custom_call.1} parent=1 // pred_check_branch
      %50 = sbr.rel (%p48) target = $region25
    $region24: #{tpu_custom_call.1} parent=1 // pred_region
      %vm51 = vcmask 130048
      %52 = vst.msk [vmem:[#allocation2] sm:$0xff] %vm51, 0.0
    $region25: #{tpu_custom_call.1} parent=1 // pred_fallthru
      _
    %v53 = vld [vmem:[#allocation8] sm:$0xff]
    %v54 = vld [vmem:[#allocation8 + $0x8] sm:$0xff]
    %s55 = sld [smem:[#allocation4]]
    %s56 = sld [smem:[#allocation4 + $0x1]]
    %s57 = sld [smem:[#allocation4 + $0x2]]
    %v58 = vstv %s56
    %v59 = vmul.f32 %v53, %v58
    %v60 = vmul.f32 %v54, %v58
    %v61 = vstv %s57
    %v62 = vadd.f32 %v59, %v61
    %v63 = vadd.f32 %v60, %v61
    %v64 = vround.ne.pseudo %v62
    %v65 = vround.ne.pseudo %v63
    %v66 = vmax.f32 %v64, 0.0
    %v67 = vmax.f32 %v65, 0.0
    %v68 = vmin.f32 %v66, 255.0
    %v69 = vmin.f32 %v67, 255.0
    %v70 = vsub.f32 %v68, %v61
    %v71 = vsub.f32 %v69, %v61
    %v72 = vstv %s55
    %v73 = vmul.f32 %v70, %v72
    %v74 = vmul.f32 %v71, %v72
    %v75 = vld [vmem:[#allocation2] sm:$0xff]
    %v76 = vld [vmem:[#allocation5] sm:$0xff]
    %v77 = vpack.c.bf16 %v76, %v76
    %v78 = vpack.c.bf16 %v74, %v73
    %vm79 = vcmask 261120
    %v81 = vsel %vm79, %v77, 0
    %v84 = vsel %vm79, %v78, 0
    %86 = vmatprep.subr.bf16.mxu0 0
    %87 = vmatpush1.bf16.xpose.msra.mxu0 %v84
    %88 = vmatprep.subr.bf16.mxu0 0
    %89 = vmatpush1.bf16.xpose.msra.mxu0 0
    %90 = vmatprep.subr.bf16.mxu0 0
    %91 = vmatpush1.bf16.xpose.msra.mxu0 0
    %92 = vmatprep.subr.bf16.mxu0 0
    %93 = vmatpush1.bf16.xpose.msra.mxu0 0
    %94 = vmatprep.subr.bf16.mxu0 0
    %95 = vmatpush1.bf16.xpose.msra.mxu0 0
    %96 = vmatprep.subr.bf16.mxu0 0
    %97 = vmatpush1.bf16.xpose.msra.mxu0 0
    %98 = vmatprep.subr.bf16.mxu0 0
    %99 = vmatpush1.bf16.xpose.msra.mxu0 0
    %100 = vmatprep.subr.bf16.mxu0 0
    %101 = vmatpush1.bf16.xpose.msra.mxu0 0
    %102 = vmatprep.subr.bf16.mxu0 0
    %103 = vmatpush1.bf16.xpose.msra.mxu0 0
    %104 = vmatprep.subr.bf16.mxu0 0
    %105 = vmatpush1.bf16.xpose.msra.mxu0 0
    %106 = vmatprep.subr.bf16.mxu0 0
    %107 = vmatpush1.bf16.xpose.msra.mxu0 0
    %108 = vmatprep.subr.bf16.mxu0 0
    %109 = vmatpush1.bf16.xpose.msra.mxu0 0
    %110 = vmatprep.subr.bf16.mxu0 0
    %111 = vmatpush1.bf16.xpose.msra.mxu0 0
    %112 = vmatprep.subr.bf16.mxu0 0
    %113 = vmatpush1.bf16.xpose.msra.mxu0 0
    %114 = vmatprep.subr.bf16.mxu0 0
    %115 = vmatpush1.bf16.xpose.msra.mxu0 0
    %116 = vmatprep.subr.bf16.mxu0 0
    %117 = vmatpush1.bf16.xpose.msra.mxu0 0
    %118 = vmatprep.mubr.bf16.mxu0 0
    %119 = vmatmul.mubr.bf16.gmra.mrb[0].mxu0 %v81
    %v120 = vpop.f32.mrb[0].mxu0
    %v121 = vadd.f32 0.0, %v120
    %v122 = vpop.f32.mrb[0].mxu0
    %v123 = vpop.f32.mrb[0].mxu0
    %v124 = vpop.f32.mrb[0].mxu0
    %125 = vdwg.mxu0
    %v126 = vadd.f32 %v75, %v121
    %vm127 = vcmask 130048
    %128 = vst.msk [vmem:[#allocation2] sm:$0xff] %vm127, %v126
    // Predicated region
    $region26: #{tpu_custom_call.1} parent=1 // pred_check
      %p129 = pneg %p47
    $region27: #{tpu_custom_call.1} parent=1 // pred_check_branch
      %131 = sbr.rel (%p129) target = $region29
    $region28: #{tpu_custom_call.1} parent=1 // pred_region
      %v132 = vld [vmem:[#allocation2] sm:$0xff]
      %v133 = vld [vmem:[%s3] sm:$0x1]
      %v135 = vlaneseq
      %v136 = vshrl.u32 %v135, 7
      %v137 = vsub.s32 0, %v136
      %v138 = vrot.slane %v133, %v137
      %v140 = vadd.f32 %v132, %v138
      %141 = vst.msk [vmem:[#allocation10] sm:$0xff] %vm127, %v140
    $region29: #{tpu_custom_call.1} parent=1 // pred_fallthru
      _
    // Predicated region
    $region30: #{tpu_custom_call.1} parent=1 // pred_check
      _
    $region31: #{tpu_custom_call.1} parent=1 // pred_check_branch
      %143 = sbr.rel (0) target = $region33
    $region32: #{tpu_custom_call.1} parent=1 // pred_region
      %s145 = ssub.s32 128, 128
      %146 = vsyncadd [#allocation7], %s145
      %s148 = sshll.u32 [#allocation10], 4
      %s149 = int_to_ptr.vmem [resolvable:$true] %s148
      %151 = dma.vmem_to_hbm [thread:$0]  %s149, 128, %s4, [#allocation7]
    $region33: #{tpu_custom_call.1} parent=1 // pred_fallthru
      _
    // Predicated region
    $region34: #{tpu_custom_call.1} parent=1 // pred_check
      _
    $region35: #{tpu_custom_call.1} parent=1 // pred_check_branch
      %153 = sbr.rel (0) target = $region37
    $region36: #{tpu_custom_call.1} parent=1 // pred_region
      %154 = dma.done [#allocation7], 128
    $region37: #{tpu_custom_call.1} parent=1 // pred_fallthru
      _
    %155 = vsyncpa [#allocation6], 1
    %156 = vsyncpa [#allocation9], 1
    %157 = vsyncpa [#allocation7], 1

</llo_original>
